<compile_context>
chip_gen: v6e
topology: v6e:2x2x1
jax: 0.10.0
libtpu: 0.0.40
codegen_flags: <defaults>
</compile_context>

<pallas_src>
import jax
import jax.numpy as jnp
from jax import lax
from jax.experimental import pallas as pl
from jax.experimental.pallas import tpu as pltpu


_MIB = 1024 * 1024


def _vmem_capacity_bytes():
    try:
        info = pltpu.get_tpu_info()
        cap = getattr(info, "vmem_capacity_bytes", None)
        if cap:
            return int(cap)
    except Exception:
        pass
    return 64 * _MIB  # conservative fallback (v7x physical VMEM)


def _pick_lane_tile(hw2, c):
    """Lane-tile along the H*W*2 axis: multiple of 128 dividing hw2, ~2 MiB block."""
    target = max(512, min(8192, (2 * _MIB) // (4 * max(c, 1))))
    target = max(128, (target // 128) * 128)
    if hw2 % 128 != 0 or hw2 <= target:
        # TODO(synk): ragged hw2 (not a multiple of 128) falls back to a single
        # full-width block; pad+mask would be needed for huge ragged widths.
        return hw2
    lt = target
    while lt >= 128:
        if hw2 % lt == 0:
            return lt
        lt -= 128
    return hw2


# --------------------- resident single-pass kernel (1R + 1W) -----------------

def _make_resident_kernel(eps):
    def kernel(x_ref, gamma_ref, beta_ref, o_ref):
        x = x_ref[...].astype(jnp.float32)            # (N, C, HW2)
        n, _, hw2 = x.shape
        cnt = n * (hw2 // 2)                          # samples per component
        lane = lax.broadcasted_iota(jnp.int32, (1, 1, hw2), 2)
        is_imag = (lane % 2) == 1

        xr = jnp.where(is_imag, 0.0, x)
        xi = x - xr

        def _mean(v):                                 # -> (1, C, 1)
            s = jnp.sum(v, axis=2, keepdims=True)
            return jnp.sum(s, axis=0, keepdims=True) / cnt

        mean_r = _mean(xr)
        mean_i = _mean(xi)
        cr = jnp.where(is_imag, 0.0, x - mean_r)
        ci = jnp.where(is_imag, x - mean_i, 0.0)
        var_r = _mean(cr * cr)                        # biased variance
        var_i = _mean(ci * ci)

        scale_r = gamma_ref[0] * lax.rsqrt(var_r + eps)
        scale_i = gamma_ref[1] * lax.rsqrt(var_i + eps)
        bias_r = beta_ref[0] - mean_r * scale_r
        bias_i = beta_ref[1] - mean_i * scale_i

        sc = jnp.where(is_imag, scale_i, scale_r)     # (1, C, HW2)
        bs = jnp.where(is_imag, bias_i, bias_r)
        o_ref[...] = (x * sc + bs).astype(o_ref.dtype)

    return kernel


def _cbn_resident(x_slab, gamma, beta, eps, vmem_limit):
    N, C, HW2 = x_slab.shape
    return pl.pallas_call(
        _make_resident_kernel(eps),
        out_shape=jax.ShapeDtypeStruct((N, C, HW2), x_slab.dtype),
        grid_spec=pltpu.PrefetchScalarGridSpec(
            num_scalar_prefetch=0,
            grid=(1,),
            in_specs=[
                pl.BlockSpec((N, C, HW2), lambda i: (0, 0, 0)),
                pl.BlockSpec((2, C, 1), lambda i: (0, 0, 0)),
                pl.BlockSpec((2, C, 1), lambda i: (0, 0, 0)),
            ],
            out_specs=pl.BlockSpec((N, C, HW2), lambda i: (0, 0, 0)),
        ),
        compiler_params=pltpu.CompilerParams(
            dimension_semantics=("arbitrary",),
            vmem_limit_bytes=vmem_limit,
        ),
    )(x_slab, gamma, beta)


# ---------------------- streaming two-pass path (2R + 1W) --------------------

def _make_stats_kernel(half):
    def kernel(x_ref, s_ref):
        # s_ref rows: 0=shift_r, 1=shift_i, 2=S_r, 3=S_i, 4=Q_r, 5=Q_i
        x = x_ref[0].astype(jnp.float32)              # (C, LT)
        c, lt = x.shape
        lane = lax.broadcasted_iota(jnp.int32, (1, lt), 1)
        is_imag = (lane % 2) == 1

        @pl.when(jnp.logical_and(pl.program_id(0) == 0, pl.program_id(1) == 0))
        def _init():
            xr0 = jnp.where(is_imag, 0.0, x)
            xi0 = x - xr0
            s_ref[0] = jnp.sum(xr0, axis=-1, keepdims=True) / half
            s_ref[1] = jnp.sum(xi0, axis=-1, keepdims=True) / half
            zero = jnp.zeros((c, 1), jnp.float32)
            s_ref[2] = zero
            s_ref[3] = zero
            s_ref[4] = zero
            s_ref[5] = zero

        shift_r = s_ref[0]
        shift_i = s_ref[1]
        yr = jnp.where(is_imag, 0.0, x - shift_r)
        yi = jnp.where(is_imag, x - shift_i, 0.0)
        s_ref[2] = s_ref[2] + jnp.sum(yr, axis=-1, keepdims=True)
        s_ref[3] = s_ref[3] + jnp.sum(yi, axis=-1, keepdims=True)
        s_ref[4] = s_ref[4] + jnp.sum(yr * yr, axis=-1, keepdims=True)
        s_ref[5] = s_ref[5] + jnp.sum(yi * yi, axis=-1, keepdims=True)

    return kernel


def _apply_kernel(x_ref, scale_ref, bias_ref, o_ref):
    x = x_ref[...].astype(jnp.float32)                # (1, C, LT)
    lt = x.shape[-1]
    lane = lax.broadcasted_iota(jnp.int32, (1, 1, lt), 2)
    is_imag = (lane % 2) == 1
    sc = jnp.where(is_imag, scale_ref[1], scale_ref[0])
    bs = jnp.where(is_imag, bias_ref[1], bias_ref[0])
    o_ref[...] = (x * sc + bs).astype(o_ref.dtype)


def _cbn_streaming(x_slab, gamma_r, beta_r, gamma_i, beta_i, eps, vmem_cap):
    N, C, HW2 = x_slab.shape
    lane_tile = _pick_lane_tile(HW2, C)
    num_tiles = HW2 // lane_tile
    blk_bytes = C * lane_tile * 4
    vmem_limit = min(int(0.75 * vmem_cap), max(32 * _MIB, 6 * blk_bytes + 4 * _MIB))

    # Pass 1: shifted per-channel / per-component sums & sums-of-squares.
    stats = pl.pallas_call(
        _make_stats_kernel(lane_tile // 2),
        out_shape=jax.ShapeDtypeStruct((6, C, 1), jnp.float32),
        grid_spec=pltpu.PrefetchScalarGridSpec(
            num_scalar_prefetch=0,
            grid=(N, num_tiles),
            in_specs=[pl.BlockSpec((1, C, lane_tile), lambda n, t: (n, 0, t))],
            out_specs=pl.BlockSpec((6, C, 1), lambda n, t: (0, 0, 0)),
        ),
        compiler_params=pltpu.CompilerParams(
            dimension_semantics=("arbitrary", "arbitrary"),
            vmem_limit_bytes=vmem_limit,
        ),
    )(x_slab)

    # Fold batch stats + affine params into per-channel scale/bias (tiny, XLA).
    cnt = jnp.float32(N * (HW2 // 2))
    shift_r, shift_i = stats[0, :, 0], stats[1, :, 0]
    d_r, d_i = stats[2, :, 0] / cnt, stats[3, :, 0] / cnt
    q_r, q_i = stats[4, :, 0] / cnt, stats[5, :, 0] / cnt
    mean_r, mean_i = shift_r + d_r, shift_i + d_i
    var_r = jnp.maximum(q_r - d_r * d_r, 0.0)
    var_i = jnp.maximum(q_i - d_i * d_i, 0.0)
    scale_r = gamma_r.astype(jnp.float32) * lax.rsqrt(var_r + eps)
    scale_i = gamma_i.astype(jnp.float32) * lax.rsqrt(var_i + eps)
    bias_r = beta_r.astype(jnp.float32) - mean_r * scale_r
    bias_i = beta_i.astype(jnp.float32) - mean_i * scale_i
    scale = jnp.stack([scale_r, scale_i], axis=0).reshape(2, C, 1)
    bias = jnp.stack([bias_r, bias_i], axis=0).reshape(2, C, 1)

    # Pass 2: streamed apply, fully parallel grid.
    return pl.pallas_call(
        _apply_kernel,
        out_shape=jax.ShapeDtypeStruct((N, C, HW2), x_slab.dtype),
        grid_spec=pltpu.PrefetchScalarGridSpec(
            num_scalar_prefetch=0,
            grid=(N, num_tiles),
            in_specs=[
                pl.BlockSpec((1, C, lane_tile), lambda n, t: (n, 0, t)),
                pl.BlockSpec((2, C, 1), lambda n, t: (0, 0, 0)),
                pl.BlockSpec((2, C, 1), lambda n, t: (0, 0, 0)),
            ],
            out_specs=pl.BlockSpec((1, C, lane_tile), lambda n, t: (n, 0, t)),
        ),
        compiler_params=pltpu.CompilerParams(
            dimension_semantics=("parallel", "parallel"),
            vmem_limit_bytes=vmem_limit,
        ),
    )(x_slab, scale, bias)


# ---------------------------------- wrapper ----------------------------------

def cbatchnorm2d(x, gamma_r, beta_r, gamma_i, beta_i, eps=1e-5,
                 force_streaming=False):
    """x: (N, C, H, W, 2). Returns same shape/dtype (training-mode batch stats)."""
    N, C, H, W, two = x.shape
    assert two == 2
    HW2 = H * W * 2
    # Free reshape (contiguous trailing dims): real/imag stay interleaved on
    # the lane axis and are separated inside the kernels -> no HBM transpose.
    x_slab = x.reshape(N, C, HW2)

    vmem_cap = _vmem_capacity_bytes()
    x_bytes = x.size * x.dtype.itemsize
    # Resident path needs in + out, double-buffered (~4x x_bytes).
    resident_ok = (4 * x_bytes + 2 * _MIB) <= int(0.7 * vmem_cap)

    if resident_ok and not force_streaming:
        gamma = jnp.stack([gamma_r, gamma_i], axis=0).reshape(2, C, 1).astype(jnp.float32)
        beta = jnp.stack([beta_r, beta_i], axis=0).reshape(2, C, 1).astype(jnp.float32)
        out_slab = _cbn_resident(x_slab, gamma, beta, eps, int(0.75 * vmem_cap))
    else:
        out_slab = _cbn_streaming(x_slab, gamma_r, beta_r, gamma_i, beta_i, eps, vmem_cap)

    return out_slab.reshape(N, C, H, W, 2)


def _reference(x, gamma_r, beta_r, gamma_i, beta_i, eps=1e-5):
    def bn(v, g, b):  # v: (N, C, H, W)
        mean = jnp.mean(v, axis=(0, 2, 3), keepdims=True)
        var = jnp.mean((v - mean) ** 2, axis=(0, 2, 3), keepdims=True)
        return (v - mean) * lax.rsqrt(var + eps) * g.reshape(1, -1, 1, 1) + b.reshape(1, -1, 1, 1)

    real = bn(x[..., 0], gamma_r, beta_r)
    imag = bn(x[..., 1], gamma_i, beta_i)
    return jnp.stack([real, imag], axis=-1)


if __name__ == "__main__":
    key = jax.random.PRNGKey(0)
    kx, kgr, kbr, kgi, kbi = jax.random.split(key, 5)

    N, C, H, W = 2, 4, 16, 16
    x = jax.random.normal(kx, (N, C, H, W, 2), dtype=jnp.float32)

    gamma_r = 1.0 + 0.1 * jax.random.normal(kgr, (C,), dtype=jnp.float32)
    beta_r = 0.1 * jax.random.normal(kbr, (C,), dtype=jnp.float32)
    gamma_i = 1.0 + 0.1 * jax.random.normal(kgi, (C,), dtype=jnp.float32)
    beta_i = 0.1 * jax.random.normal(kbi, (C,), dtype=jnp.float32)

    ref = _reference(x, gamma_r, beta_r, gamma_i, beta_i)

    # Resident single-pass path (demo slab is tiny, so this is the hot path).
    out_res = jax.block_until_ready(cbatchnorm2d(x, gamma_r, beta_r, gamma_i, beta_i))
    assert out_res.shape == (N, C, H, W, 2)
    assert jnp.allclose(out_res, ref, atol=1e-4, rtol=1e-4), "resident path mismatch"

    # Tiled streaming two-pass path (used for activations too big for VMEM).
    out_str = jax.block_until_ready(
        cbatchnorm2d(x, gamma_r, beta_r, gamma_i, beta_i, force_streaming=True))
    assert out_str.shape == (N, C, H, W, 2)
    assert jnp.allclose(out_str, ref, atol=1e-4, rtol=1e-4), "streaming path mismatch"

    print("KERNEL_OK")
</pallas_src>

<mosaic_0001>
module attributes {stable_mosaic.version = 11 : i64} {
  func.func @kernel(%arg0: i32, %arg1: memref<2x4x512xf32, #tpu.memory_space<vmem>>, %arg2: memref<2x4x1xf32, #tpu.memory_space<vmem>>, %arg3: memref<2x4x1xf32, #tpu.memory_space<vmem>>, %arg4: memref<2x4x512xf32, #tpu.memory_space<vmem>>) attributes {dimension_semantics = [#tpu.dimension_semantics<arbitrary>], iteration_bounds = array<i64: 1>, scalar_prefetch = 0 : i64, scratch_operands = 0 : i64, tpu.core_type = #tpu.core_type<tc>, window_params = [{pipeline_mode = #tpu.pipeline_mode<synchronous>, transform_indices = @transform_0, window_bounds = array<i64: 2, 4, 512>}, {pipeline_mode = #tpu.pipeline_mode<synchronous>, transform_indices = @transform_1, window_bounds = array<i64: 2, 4, 1>}, {pipeline_mode = #tpu.pipeline_mode<synchronous>, transform_indices = @transform_2, window_bounds = array<i64: 2, 4, 1>}, {pipeline_mode = #tpu.pipeline_mode<synchronous>, transform_indices = @transform_3, window_bounds = array<i64: 2, 4, 512>}]} {
    %c0 = arith.constant 0 : index
    %c0_0 = arith.constant 0 : index
    %c0_1 = arith.constant 0 : index
    %0 = vector.load %arg1[%c0, %c0_0, %c0_1] : memref<2x4x512xf32, #tpu.memory_space<vmem>>, vector<2x4x512xf32>
    %1 = tpu.iota {dimensions = array<i32: 2>} : vector<1x1x512xi32>
    %c2_i32 = arith.constant 2 : i32
    %c0_i32 = arith.constant 0 : i32
    %2 = arith.cmpi eq, %c2_i32, %c0_i32 : i32
    %c1_i32 = arith.constant 1 : i32
    %3 = arith.select %2, %c1_i32, %c2_i32 : i32
    %4 = vector.broadcast %3 : i32 to vector<1x1x512xi32>
    %5 = arith.remsi %1, %4 : vector<1x1x512xi32>
    %c0_i32_2 = arith.constant 0 : i32
    %6 = vector.broadcast %c0_i32_2 : i32 to vector<1x1x512xi32>
    %7 = arith.cmpi ne, %5, %6 : vector<1x1x512xi32>
    %c0_i32_3 = arith.constant 0 : i32
    %8 = vector.broadcast %c0_i32_3 : i32 to vector<1x1x512xi32>
    %9 = arith.cmpi slt, %5, %8 : vector<1x1x512xi32>
    %c0_i32_4 = arith.constant 0 : i32
    %10 = arith.cmpi slt, %3, %c0_i32_4 : i32
    %11 = vector.broadcast %10 : i1 to vector<1x1x512xi1>
    %12 = vector.broadcast %11 : vector<1x1x512xi1> to vector<1x1x512xi1>
    %13 = arith.xori %9, %12 : vector<1x1x512xi1>
    %14 = arith.andi %13, %7 : vector<1x1x512xi1>
    %15 = vector.broadcast %3 : i32 to vector<1x1x512xi32>
    %16 = arith.addi %5, %15 : vector<1x1x512xi32>
    %17 = arith.select %14, %16, %5 : vector<1x1x512xi1>, vector<1x1x512xi32>
    %c1_i32_5 = arith.constant 1 : i32
    %18 = vector.broadcast %c1_i32_5 : i32 to vector<1x1x512xi32>
    %19 = arith.cmpi eq, %17, %18 : vector<1x1x512xi32>
    %cst = arith.constant 0.000000e+00 : f32
    %20 = vector.shape_cast %19 : vector<1x1x512xi1> to vector<1x1x512xi1>
    %21 = vector.broadcast %20 : vector<1x1x512xi1> to vector<2x4x512xi1>
    %22 = vector.broadcast %cst : f32 to vector<2x4x512xf32>
    %23 = arith.select %21, %22, %0 : vector<2x4x512xi1>, vector<2x4x512xf32>
    %24 = arith.subf %0, %23 : vector<2x4x512xf32>
    %cst_6 = arith.constant dense<0.000000e+00> : vector<2x4xf32>
    %25 = vector.multi_reduction <add>, %23, %cst_6 [2] : vector<2x4x512xf32> to vector<2x4xf32>
    %26 = vector.shape_cast %25 : vector<2x4xf32> to vector<2x4x1xf32>
    %cst_7 = arith.constant dense<0.000000e+00> : vector<4x1xf32>
    %27 = vector.multi_reduction <add>, %26, %cst_7 [0] : vector<2x4x1xf32> to vector<4x1xf32>
    %28 = vector.shape_cast %27 : vector<4x1xf32> to vector<1x4x1xf32>
    %cst_8 = arith.constant 5.120000e+02 : f32
    %29 = vector.broadcast %cst_8 : f32 to vector<1x4x1xf32>
    %30 = arith.divf %28, %29 : vector<1x4x1xf32>
    %cst_9 = arith.constant dense<0.000000e+00> : vector<2x4xf32>
    %31 = vector.multi_reduction <add>, %24, %cst_9 [2] : vector<2x4x512xf32> to vector<2x4xf32>
    %32 = vector.shape_cast %31 : vector<2x4xf32> to vector<2x4x1xf32>
    %cst_10 = arith.constant dense<0.000000e+00> : vector<4x1xf32>
    %33 = vector.multi_reduction <add>, %32, %cst_10 [0] : vector<2x4x1xf32> to vector<4x1xf32>
    %34 = vector.shape_cast %33 : vector<4x1xf32> to vector<1x4x1xf32>
    %cst_11 = arith.constant 5.120000e+02 : f32
    %35 = vector.broadcast %cst_11 : f32 to vector<1x4x1xf32>
    %36 = arith.divf %34, %35 : vector<1x4x1xf32>
    %37 = vector.broadcast %30 : vector<1x4x1xf32> to vector<2x4x512xf32>
    %38 = arith.subf %0, %37 : vector<2x4x512xf32>
    %cst_12 = arith.constant 0.000000e+00 : f32
    %39 = vector.shape_cast %19 : vector<1x1x512xi1> to vector<1x1x512xi1>
    %40 = vector.broadcast %39 : vector<1x1x512xi1> to vector<2x4x512xi1>
    %41 = vector.broadcast %cst_12 : f32 to vector<2x4x512xf32>
    %42 = arith.select %40, %41, %38 : vector<2x4x512xi1>, vector<2x4x512xf32>
    %43 = vector.broadcast %36 : vector<1x4x1xf32> to vector<2x4x512xf32>
    %44 = arith.subf %0, %43 : vector<2x4x512xf32>
    %cst_13 = arith.constant 0.000000e+00 : f32
    %45 = vector.shape_cast %19 : vector<1x1x512xi1> to vector<1x1x512xi1>
    %46 = vector.broadcast %45 : vector<1x1x512xi1> to vector<2x4x512xi1>
    %47 = vector.broadcast %cst_13 : f32 to vector<2x4x512xf32>
    %48 = arith.select %46, %44, %47 : vector<2x4x512xi1>, vector<2x4x512xf32>
    %49 = arith.mulf %42, %42 : vector<2x4x512xf32>
    %cst_14 = arith.constant dense<0.000000e+00> : vector<2x4xf32>
    %50 = vector.multi_reduction <add>, %49, %cst_14 [2] : vector<2x4x512xf32> to vector<2x4xf32>
    %51 = vector.shape_cast %50 : vector<2x4xf32> to vector<2x4x1xf32>
    %cst_15 = arith.constant dense<0.000000e+00> : vector<4x1xf32>
    %52 = vector.multi_reduction <add>, %51, %cst_15 [0] : vector<2x4x1xf32> to vector<4x1xf32>
    %53 = vector.shape_cast %52 : vector<4x1xf32> to vector<1x4x1xf32>
    %cst_16 = arith.constant 5.120000e+02 : f32
    %54 = vector.broadcast %cst_16 : f32 to vector<1x4x1xf32>
    %55 = arith.divf %53, %54 : vector<1x4x1xf32>
    %56 = arith.mulf %48, %48 : vector<2x4x512xf32>
    %cst_17 = arith.constant dense<0.000000e+00> : vector<2x4xf32>
    %57 = vector.multi_reduction <add>, %56, %cst_17 [2] : vector<2x4x512xf32> to vector<2x4xf32>
    %58 = vector.shape_cast %57 : vector<2x4xf32> to vector<2x4x1xf32>
    %cst_18 = arith.constant dense<0.000000e+00> : vector<4x1xf32>
    %59 = vector.multi_reduction <add>, %58, %cst_18 [0] : vector<2x4x1xf32> to vector<4x1xf32>
    %60 = vector.shape_cast %59 : vector<4x1xf32> to vector<1x4x1xf32>
    %cst_19 = arith.constant 5.120000e+02 : f32
    %61 = vector.broadcast %cst_19 : f32 to vector<1x4x1xf32>
    %62 = arith.divf %60, %61 : vector<1x4x1xf32>
    %c0_20 = arith.constant 0 : index
    %c0_21 = arith.constant 0 : index
    %c0_22 = arith.constant 0 : index
    %63 = vector.load %arg2[%c0_20, %c0_21, %c0_22] : memref<2x4x1xf32, #tpu.memory_space<vmem>>, vector<1x4x1xf32>
    %64 = vector.shape_cast %63 : vector<1x4x1xf32> to vector<4x1xf32>
    %cst_23 = arith.constant 9.99999974E-6 : f32
    %65 = vector.broadcast %cst_23 : f32 to vector<1x4x1xf32>
    %66 = arith.addf %55, %65 : vector<1x4x1xf32>
    %67 = math.rsqrt %66 : vector<1x4x1xf32>
    %68 = vector.shape_cast %64 : vector<4x1xf32> to vector<1x4x1xf32>
    %69 = arith.mulf %68, %67 : vector<1x4x1xf32>
    %c1 = arith.constant 1 : index
    %c0_24 = arith.constant 0 : index
    %c0_25 = arith.constant 0 : index
    %70 = vector.load %arg2[%c1, %c0_24, %c0_25] : memref<2x4x1xf32, #tpu.memory_space<vmem>>, vector<1x4x1xf32>
    %71 = vector.shape_cast %70 : vector<1x4x1xf32> to vector<4x1xf32>
    %cst_26 = arith.constant 9.99999974E-6 : f32
    %72 = vector.broadcast %cst_26 : f32 to vector<1x4x1xf32>
    %73 = arith.addf %62, %72 : vector<1x4x1xf32>
    %74 = math.rsqrt %73 : vector<1x4x1xf32>
    %75 = vector.shape_cast %71 : vector<4x1xf32> to vector<1x4x1xf32>
    %76 = arith.mulf %75, %74 : vector<1x4x1xf32>
    %c0_27 = arith.constant 0 : index
    %c0_28 = arith.constant 0 : index
    %c0_29 = arith.constant 0 : index
    %77 = vector.load %arg3[%c0_27, %c0_28, %c0_29] : memref<2x4x1xf32, #tpu.memory_space<vmem>>, vector<1x4x1xf32>
    %78 = vector.shape_cast %77 : vector<1x4x1xf32> to vector<4x1xf32>
    %79 = arith.mulf %30, %69 : vector<1x4x1xf32>
    %80 = vector.shape_cast %78 : vector<4x1xf32> to vector<1x4x1xf32>
    %81 = arith.subf %80, %79 : vector<1x4x1xf32>
    %c1_30 = arith.constant 1 : index
    %c0_31 = arith.constant 0 : index
    %c0_32 = arith.constant 0 : index
    %82 = vector.load %arg3[%c1_30, %c0_31, %c0_32] : memref<2x4x1xf32, #tpu.memory_space<vmem>>, vector<1x4x1xf32>
    %83 = vector.shape_cast %82 : vector<1x4x1xf32> to vector<4x1xf32>
    %84 = arith.mulf %36, %76 : vector<1x4x1xf32>
    %85 = vector.shape_cast %83 : vector<4x1xf32> to vector<1x4x1xf32>
    %86 = arith.subf %85, %84 : vector<1x4x1xf32>
    %87 = vector.shape_cast %19 : vector<1x1x512xi1> to vector<1x1x512xi1>
    %88 = vector.broadcast %87 : vector<1x1x512xi1> to vector<1x4x512xi1>
    %89 = vector.shape_cast %76 : vector<1x4x1xf32> to vector<1x4x1xf32>
    %90 = vector.broadcast %89 : vector<1x4x1xf32> to vector<1x4x512xf32>
    %91 = vector.shape_cast %69 : vector<1x4x1xf32> to vector<1x4x1xf32>
    %92 = vector.broadcast %91 : vector<1x4x1xf32> to vector<1x4x512xf32>
    %93 = arith.select %88, %90, %92 : vector<1x4x512xi1>, vector<1x4x512xf32>
    %94 = vector.shape_cast %19 : vector<1x1x512xi1> to vector<1x1x512xi1>
    %95 = vector.broadcast %94 : vector<1x1x512xi1> to vector<1x4x512xi1>
    %96 = vector.shape_cast %86 : vector<1x4x1xf32> to vector<1x4x1xf32>
    %97 = vector.broadcast %96 : vector<1x4x1xf32> to vector<1x4x512xf32>
    %98 = vector.shape_cast %81 : vector<1x4x1xf32> to vector<1x4x1xf32>
    %99 = vector.broadcast %98 : vector<1x4x1xf32> to vector<1x4x512xf32>
    %100 = arith.select %95, %97, %99 : vector<1x4x512xi1>, vector<1x4x512xf32>
    %101 = vector.broadcast %93 : vector<1x4x512xf32> to vector<2x4x512xf32>
    %102 = arith.mulf %0, %101 : vector<2x4x512xf32>
    %103 = vector.broadcast %100 : vector<1x4x512xf32> to vector<2x4x512xf32>
    %104 = arith.addf %102, %103 : vector<2x4x512xf32>
    %c0_33 = arith.constant 0 : index
    %c0_34 = arith.constant 0 : index
    %c0_35 = arith.constant 0 : index
    %105 = vector.load %arg4[%c0_33, %c0_34, %c0_35] : memref<2x4x512xf32, #tpu.memory_space<vmem>>, vector<2x4x512xf32>
    tpu.vector_store %arg4[%c0_33, %c0_34, %c0_35], %104 {strides = array<i32>} : memref<2x4x512xf32, #tpu.memory_space<vmem>>, vector<2x4x512xf32>,
    return
  }
  func.func @transform_0(%arg0: i32) -> (i32, i32, i32) {
    %c0_i32 = arith.constant 0 : i32
    %c0_i32_0 = arith.constant 0 : i32
    %c0_i32_1 = arith.constant 0 : i32
    %c0_i32_2 = arith.constant 0 : i32
    return %c0_i32, %c0_i32_0, %c0_i32_1 : i32, i32, i32
  }
  func.func @transform_1(%arg0: i32) -> (i32, i32, i32) {
    %c0_i32 = arith.constant 0 : i32
    %c0_i32_0 = arith.constant 0 : i32
    %c0_i32_1 = arith.constant 0 : i32
    %c0_i32_2 = arith.constant 0 : i32
    return %c0_i32, %c0_i32_0, %c0_i32_1 : i32, i32, i32
  }
  func.func @transform_2(%arg0: i32) -> (i32, i32, i32) {
    %c0_i32 = arith.constant 0 : i32
    %c0_i32_0 = arith.constant 0 : i32
    %c0_i32_1 = arith.constant 0 : i32
    %c0_i32_2 = arith.constant 0 : i32
    return %c0_i32, %c0_i32_0, %c0_i32_1 : i32, i32, i32
  }
  func.func @transform_3(%arg0: i32) -> (i32, i32, i32) {
    %c0_i32 = arith.constant 0 : i32
    %c0_i32_0 = arith.constant 0 : i32
    %c0_i32_1 = arith.constant 0 : i32
    %c0_i32_2 = arith.constant 0 : i32
    return %c0_i32, %c0_i32_0, %c0_i32_1 : i32, i32, i32
  }
}

</mosaic_0001>

<llo_original>
// kernel: tpu_custom_call.1
$region0: #{tpu_custom_call.1}
  #allocation0 [shape = 'u32[]', space=smem, size = 0x4, offset = 0x4, fixed_abs, tag = 'smem constant byte address 0x4 - core index']
  #allocation1 [shape = 'u32[144,128]{1,0:T(1,128)}', space=vmem, size = 0x12000, scoped, tag = 'internal scratch']
  %s0 = inlined_call_operand.hbm [shape: f32[2,4,512], index: 0, kind: input, shape index: {}]
  %s1 = inlined_call_operand.vmem [shape: f32[2,4,1], index: 1, kind: input, shape index: {}]
  %s2 = inlined_call_operand.vmem [shape: f32[2,4,1], index: 2, kind: input, shape index: {}]
  %s3 = inlined_call_operand.hbm [shape: f32[2,4,512], index: 3, kind: output, shape index: {}]
  %s4 = sld [smem:[#allocation0]]
  $region26: #{tpu_custom_call.1} parent=0
    _
  %s6 = ssub.s32 1, %s4
  %s7 = scalar_select 0, %s6, %s4
  $region1: #{tpu_custom_call.1} parent=0
    #allocation2 [shape = 'u8[16384]{0}', space=vmem, size = 0x4000, scoped, tag = 'input window, operand 0, single buffered']
    #allocation3 [shape = 's32[1]{0}', space=sflag, size = 0x4, scoped, tag = 'scoped memory for tpu_custom_call.1']
    #allocation4 [shape = 's32[1]{0}', space=sflag, size = 0x4, scoped, tag = 'scoped memory for tpu_custom_call.1']
    #allocation5 [shape = 'u8[16384]{0}', space=vmem, size = 0x4000, scoped, tag = 'output window, operand 0, single buffered']
    %8 = vsyncpa [#allocation3], 0
    %9 = vsyncpa [#allocation4], 0
    // Predicated region
    $region2: #{tpu_custom_call.1} parent=1 // pred_check
      _
    $region3: #{tpu_custom_call.1} parent=1 // pred_check_branch
      %11 = sbr.rel (0) target = $region5
    $region4: #{tpu_custom_call.1} parent=1 // pred_region
      %s13 = ssub.s32 512, 512
      %14 = vsyncadd [#allocation3], %s13
      %s15 = sshll.u32 [#allocation2], 4
      %s16 = int_to_ptr.vmem [resolvable:$true] %s15
      %21 = dma.hbm_to_vmem [thread:$0]  %s0, 512, %s16, [#allocation3], 256, 256, 16
    $region5: #{tpu_custom_call.1} parent=1 // pred_fallthru
      _
    // Predicated region
    $region6: #{tpu_custom_call.1} parent=1 // pred_check
      _
    $region7: #{tpu_custom_call.1} parent=1 // pred_check_branch
      %23 = sbr.rel (0) target = $region9
    $region8: #{tpu_custom_call.1} parent=1 // pred_region
      _
    $region9: #{tpu_custom_call.1} parent=1 // pred_fallthru
      _
    // Predicated region
    $region10: #{tpu_custom_call.1} parent=1 // pred_check
      _
    $region11: #{tpu_custom_call.1} parent=1 // pred_check_branch
      %25 = sbr.rel (0) target = $region13
    $region12: #{tpu_custom_call.1} parent=1 // pred_region
      _
    $region13: #{tpu_custom_call.1} parent=1 // pred_fallthru
      _
    // Predicated region
    $region14: #{tpu_custom_call.1} parent=1 // pred_check
      _
    $region15: #{tpu_custom_call.1} parent=1 // pred_check_branch
      %27 = sbr.rel (0) target = $region17
    $region16: #{tpu_custom_call.1} parent=1 // pred_region
      %28 = dma.done [#allocation3], 512
    $region17: #{tpu_custom_call.1} parent=1 // pred_fallthru
      _
    %v29 = vld [vmem:[#allocation2] sm:$0xff]
    %v30 = vld [vmem:[#allocation2 + $0x8] sm:$0xff]
    %v31 = vld [vmem:[#allocation2 + $0x10] sm:$0xff]
    %v32 = vld [vmem:[#allocation2 + $0x18] sm:$0xff]
    %v33 = vlaneseq
    %v34 = vand.u32 %v33, 127
    %v35 = vadd.s32 %v34, 128
    %v36 = vadd.s32 %v34, 256
    %v37 = vadd.s32 %v34, 384
    %vm38 = vcmp.lt.s32.totalorder %v34, 0
    %v39 = vsub.s32 0, %v34
    %v40 = vsel %vm38, %v39, %v34
    %v41 = vshrl.u32 %v40, 1
    %v42 = vand.u32 %v40, 1
    %v43 = vsub.s32 0, %v42
    %v44 = vsel %vm38, %v43, %v42
    %vm45 = vcmp.lt.s32.totalorder %v35, 0
    %v46 = vsub.s32 0, %v35
    %v47 = vsel %vm45, %v46, %v35
    %v48 = vshrl.u32 %v47, 1
    %v49 = vand.u32 %v47, 1
    %v50 = vsub.s32 0, %v49
    %v51 = vsel %vm45, %v50, %v49
    %vm52 = vcmp.lt.s32.totalorder %v36, 0
    %v53 = vsub.s32 0, %v36
    %v54 = vsel %vm52, %v53, %v36
    %v55 = vshrl.u32 %v54, 1
    %v56 = vand.u32 %v54, 1
    %v57 = vsub.s32 0, %v56
    %v58 = vsel %vm52, %v57, %v56
    %vm59 = vcmp.lt.s32.totalorder %v37, 0
    %v60 = vsub.s32 0, %v37
    %v61 = vsel %vm59, %v60, %v37
    %v62 = vshrl.u32 %v61, 1
    %v63 = vand.u32 %v61, 1
    %v64 = vsub.s32 0, %v63
    %v65 = vsel %vm59, %v64, %v63
    %vm66 = vcmp.ne.s32.totalorder %v44, 0
    %vm67 = vcmp.ne.s32.totalorder %v51, 0
    %vm68 = vcmp.ne.s32.totalorder %v58, 0
    %vm69 = vcmp.ne.s32.totalorder %v65, 0
    %vm70 = vcmp.lt.s32.totalorder %v44, 0
    %vm71 = vcmp.lt.s32.totalorder %v51, 0
    %vm72 = vcmp.lt.s32.totalorder %v58, 0
    %vm73 = vcmp.lt.s32.totalorder %v65, 0
    %vm74 = vmand %vm70, %vm66
    %vm75 = vmand %vm71, %vm67
    %vm76 = vmand %vm72, %vm68
    %vm77 = vmand %vm73, %vm69
    %v78 = vadd.s32 %v44, 2
    %v79 = vadd.s32 %v51, 2
    %v80 = vadd.s32 %v58, 2
    %v81 = vadd.s32 %v65, 2
    %v82 = vsel %vm74, %v78, %v44
    %v83 = vsel %vm75, %v79, %v51
    %v84 = vsel %vm76, %v80, %v58
    %v85 = vsel %vm77, %v81, %v65
    %vm86 = vcmp.eq.s32.totalorder %v82, 1
    %vm87 = vcmp.eq.s32.totalorder %v83, 1
    %vm88 = vcmp.eq.s32.totalorder %v84, 1
    %vm89 = vcmp.eq.s32.totalorder %v85, 1
    %v90 = vsel %vm86, 1, 0
    %v91 = vsel %vm87, 1, 0
    %v92 = vsel %vm88, 1, 0
    %v93 = vsel %vm89, 1, 0
    %vm94 = vcmp.eq.s32.totalorder %v90, 1
    %vm95 = vcmp.eq.s32.totalorder %v91, 1
    %vm96 = vcmp.eq.s32.totalorder %v92, 1
    %vm97 = vcmp.eq.s32.totalorder %v93, 1
    %v102 = vcombine.high %v29, %v29
    %v103 = vcombine.high %v30, %v30
    %v104 = vcombine.high %v31, %v31
    %v105 = vcombine.high %v32, %v32
    %v110 = vsel %vm94, 0.0, %v29
    %v111 = vsel %vm95, 0.0, %v102
    %v112 = vsel %vm96, 0.0, %v30
    %v113 = vsel %vm97, 0.0, %v103
    %v114 = vsel %vm94, 0.0, %v31
    %v115 = vsel %vm95, 0.0, %v104
    %v116 = vsel %vm96, 0.0, %v32
    %v117 = vsel %vm97, 0.0, %v105
    %v126 = vcombine.low %v110, %v111
    %v127 = vcombine.low %v112, %v113
    %v128 = vcombine.low %v114, %v115
    %v129 = vcombine.low %v116, %v117
    %v134 = vsub.f32 %v29, %v126
    %v135 = vsub.f32 %v30, %v127
    %v136 = vsub.f32 %v31, %v128
    %v137 = vsub.f32 %v32, %v129
    %vm138 = vcmask 1043456
    %v139 = vsel %vm138, %v110, 0.0
    %v140 = vsel %vm138, %v111, 0.0
    %v141 = vadd.f32 %v139, %v140
    %v142 = vsel %vm138, %v112, 0.0
    %v143 = vadd.f32 %v141, %v142
    %v144 = vsel %vm138, %v113, 0.0
    %v145 = vadd.f32 %v143, %v144
    %146 = vadd.xlane.f32.xlu0 %v145
    %v147 = vpop.xlane.xlu0 %146
    %v148 = vsel %vm138, %v114, 0.0
    %v149 = vsel %vm138, %v115, 0.0
    %v150 = vadd.f32 %v148, %v149
    %v151 = vsel %vm138, %v116, 0.0
    %v152 = vadd.f32 %v150, %v151
    %v153 = vsel %vm138, %v117, 0.0
    %v154 = vadd.f32 %v152, %v153
    %155 = vadd.xlane.f32.xlu0 %v154
    %v156 = vpop.xlane.xlu0 %155
    %v157 = vsel %vm138, %v147, 0.0
    %v158 = vsel %vm138, %v156, 0.0
    %v159 = vadd.f32 %v157, %v158
    %v160 = vrcp.pop 512.0
    %v161 = vmul.f32 %v159, %v160
    %v166 = vcombine.high %v134, %v134
    %v167 = vcombine.high %v135, %v135
    %v168 = vcombine.high %v136, %v136
    %v169 = vcombine.high %v137, %v137
    %v174 = vsel %vm138, %v134, 0.0
    %v175 = vsel %vm138, %v166, 0.0
    %v176 = vadd.f32 %v174, %v175
    %v177 = vsel %vm138, %v135, 0.0
    %v178 = vadd.f32 %v176, %v177
    %v179 = vsel %vm138, %v167, 0.0
    %v180 = vadd.f32 %v178, %v179
    %181 = vadd.xlane.f32.xlu0 %v180
    %v182 = vpop.xlane.xlu0 %181
    %v183 = vsel %vm138, %v136, 0.0
    %v184 = vsel %vm138, %v168, 0.0
    %v185 = vadd.f32 %v183, %v184
    %v186 = vsel %vm138, %v137, 0.0
    %v187 = vadd.f32 %v185, %v186
    %v188 = vsel %vm138, %v169, 0.0
    %v189 = vadd.f32 %v187, %v188
    %190 = vadd.xlane.f32.xlu0 %v189
    %v191 = vpop.xlane.xlu0 %190
    %v192 = vsel %vm138, %v182, 0.0
    %v193 = vsel %vm138, %v191, 0.0
    %v194 = vadd.f32 %v192, %v193
    %v195 = vmul.f32 %v194, %v160
    %v198 = vunpack.c.l.s4 839922192
    %v199 = vunpack.c.0.s8 %v198
    %v200 = vlaneseq
    %v201 = vshrl.u32 %v200, 7
    %v202 = vsub.s32 %v199, %v201
    %v203 = vrot.slane %v161, %v202
    %v205 = vsub.f32 %v29, %v203
    %v206 = vsub.f32 %v30, %v203
    %v207 = vsub.f32 %v31, %v203
    %v208 = vsub.f32 %v32, %v203
    %v213 = vcombine.high %v205, %v205
    %v214 = vcombine.high %v206, %v206
    %v215 = vcombine.high %v207, %v207
    %v216 = vcombine.high %v208, %v208
    %v221 = vsel %vm94, 0.0, %v205
    %v222 = vsel %vm95, 0.0, %v213
    %v223 = vsel %vm96, 0.0, %v206
    %v224 = vsel %vm97, 0.0, %v214
    %v225 = vsel %vm94, 0.0, %v207
    %v226 = vsel %vm95, 0.0, %v215
    %v227 = vsel %vm96, 0.0, %v208
    %v228 = vsel %vm97, 0.0, %v216
    %v231 = vunpack.c.l.s4 839922192
    %v232 = vunpack.c.0.s8 %v231
    %v233 = vlaneseq
    %v234 = vshrl.u32 %v233, 7
    %v235 = vsub.s32 %v232, %v234
    %v236 = vrot.slane %v195, %v235
    %v238 = vsub.f32 %v29, %v236
    %v239 = vsub.f32 %v30, %v236
    %v240 = vsub.f32 %v31, %v236
    %v241 = vsub.f32 %v32, %v236
    %v246 = vcombine.high %v238, %v238
    %v247 = vcombine.high %v239, %v239
    %v248 = vcombine.high %v240, %v240
    %v249 = vcombine.high %v241, %v241
    %v254 = vsel %vm94, %v238, 0.0
    %v255 = vsel %vm95, %v246, 0.0
    %v256 = vsel %vm96, %v239, 0.0
    %v257 = vsel %vm97, %v247, 0.0
    %v258 = vsel %vm94, %v240, 0.0
    %v259 = vsel %vm95, %v248, 0.0
    %v260 = vsel %vm96, %v241, 0.0
    %v261 = vsel %vm97, %v249, 0.0
    %v262 = vmul.f32 %v221, %v221
    %v263 = vmul.f32 %v222, %v222
    %v264 = vmul.f32 %v223, %v223
    %v265 = vmul.f32 %v224, %v224
    %v266 = vmul.f32 %v225, %v225
    %v267 = vmul.f32 %v226, %v226
    %v268 = vmul.f32 %v227, %v227
    %v269 = vmul.f32 %v228, %v228
    %v270 = vsel %vm138, %v262, 0.0
    %v271 = vsel %vm138, %v263, 0.0
    %v272 = vadd.f32 %v270, %v271
    %v273 = vsel %vm138, %v264, 0.0
    %v274 = vadd.f32 %v272, %v273
    %v275 = vsel %vm138, %v265, 0.0
    %v276 = vadd.f32 %v274, %v275
    %277 = vadd.xlane.f32.xlu0 %v276
    %v278 = vpop.xlane.xlu0 %277
    %v279 = vsel %vm138, %v266, 0.0
    %v280 = vsel %vm138, %v267, 0.0
    %v281 = vadd.f32 %v279, %v280
    %v282 = vsel %vm138, %v268, 0.0
    %v283 = vadd.f32 %v281, %v282
    %v284 = vsel %vm138, %v269, 0.0
    %v285 = vadd.f32 %v283, %v284
    %286 = vadd.xlane.f32.xlu0 %v285
    %v287 = vpop.xlane.xlu0 %286
    %v288 = vsel %vm138, %v278, 0.0
    %v289 = vsel %vm138, %v287, 0.0
    %v290 = vadd.f32 %v288, %v289
    %v291 = vmul.f32 %v290, %v160
    %v292 = vmul.f32 %v254, %v254
    %v293 = vmul.f32 %v255, %v255
    %v294 = vmul.f32 %v256, %v256
    %v295 = vmul.f32 %v257, %v257
    %v296 = vmul.f32 %v258, %v258
    %v297 = vmul.f32 %v259, %v259
    %v298 = vmul.f32 %v260, %v260
    %v299 = vmul.f32 %v261, %v261
    %v300 = vsel %vm138, %v292, 0.0
    %v301 = vsel %vm138, %v293, 0.0
    %v302 = vadd.f32 %v300, %v301
    %v303 = vsel %vm138, %v294, 0.0
    %v304 = vadd.f32 %v302, %v303
    %v305 = vsel %vm138, %v295, 0.0
    %v306 = vadd.f32 %v304, %v305
    %307 = vadd.xlane.f32.xlu0 %v306
    %v308 = vpop.xlane.xlu0 %307
    %v309 = vsel %vm138, %v296, 0.0
    %v310 = vsel %vm138, %v297, 0.0
    %v311 = vadd.f32 %v309, %v310
    %v312 = vsel %vm138, %v298, 0.0
    %v313 = vadd.f32 %v311, %v312
    %v314 = vsel %vm138, %v299, 0.0
    %v315 = vadd.f32 %v313, %v314
    %316 = vadd.xlane.f32.xlu0 %v315
    %v317 = vpop.xlane.xlu0 %316
    %v318 = vsel %vm138, %v308, 0.0
    %v319 = vsel %vm138, %v317, 0.0
    %v320 = vadd.f32 %v318, %v319
    %v321 = vmul.f32 %v320, %v160
    %v322 = vld [vmem:[%s1] sm:$0xf]
    %v323 = vadd.f32 %v291, 1e-05
    %v324 = vrsqrt.pop %v323
    %v325 = vmul.f32 %v322, %v324
    %s326 = scalar_lea.vmem %s1, 4
    %v327 = vld [vmem:[%s326] sm:$0xf]
    %v328 = vadd.f32 %v321, 1e-05
    %v329 = vrsqrt.pop %v328
    %v330 = vmul.f32 %v327, %v329
    %v331 = vld [vmem:[%s2] sm:$0xf]
    %v332 = vmul.f32 %v161, %v325
    %v333 = vsub.f32 %v331, %v332
    %s334 = scalar_lea.vmem %s2, 4
    %v335 = vld [vmem:[%s334] sm:$0xf]
    %v336 = vmul.f32 %v195, %v330
    %v337 = vsub.f32 %v335, %v336
    %339 = vset.pattern.permute.xlu0 0
    %340 = vperm.xlu0 %339, %v330
    %v341 = vpop.permute.xlu0 %340
    %344 = vset.pattern.permute.xlu0 0
    %345 = vperm.xlu0 %344, %v325
    %v346 = vpop.permute.xlu0 %345
    %v348 = vsel %vm94, %v341, %v346
    %v349 = vsel %vm95, %v341, %v346
    %v350 = vsel %vm96, %v341, %v346
    %v351 = vsel %vm97, %v341, %v346
    %353 = vset.pattern.permute.xlu0 0
    %354 = vperm.xlu0 %353, %v337
    %v355 = vpop.permute.xlu0 %354
    %358 = vset.pattern.permute.xlu0 0
    %359 = vperm.xlu0 %358, %v333
    %v360 = vpop.permute.xlu0 %359
    %v362 = vsel %vm94, %v355, %v360
    %v363 = vsel %vm95, %v355, %v360
    %v364 = vsel %vm96, %v355, %v360
    %v365 = vsel %vm97, %v355, %v360
    %v370 = vcombine.low %v348, %v349
    %v371 = vcombine.low %v350, %v351
    %v374 = vmul.f32 %v29, %v370
    %v375 = vmul.f32 %v30, %v371
    %v376 = vmul.f32 %v31, %v370
    %v377 = vmul.f32 %v32, %v371
    %v382 = vcombine.low %v362, %v363
    %v383 = vcombine.low %v364, %v365
    %v386 = vadd.f32 %v374, %v382
    %v387 = vadd.f32 %v375, %v383
    %v388 = vadd.f32 %v376, %v382
    %v389 = vadd.f32 %v377, %v383
    %390 = vst [vmem:[#allocation5] sm:$0xff] %v386
    %391 = vst [vmem:[#allocation5 + $0x8] sm:$0xff] %v387
    %392 = vst [vmem:[#allocation5 + $0x10] sm:$0xff] %v388
    %393 = vst [vmem:[#allocation5 + $0x18] sm:$0xff] %v389
    // Predicated region
    $region18: #{tpu_custom_call.1} parent=1 // pred_check
      _
    $region19: #{tpu_custom_call.1} parent=1 // pred_check_branch
      %395 = sbr.rel (0) target = $region21
    $region20: #{tpu_custom_call.1} parent=1 // pred_region
      %s397 = ssub.s32 512, 512
      %398 = vsyncadd [#allocation4], %s397
      %s399 = sshll.u32 [#allocation5], 4
      %s400 = int_to_ptr.vmem [resolvable:$true] %s399
      %405 = dma.vmem_to_hbm [thread:$0]  %s400, 512, %s3, [#allocation4], 256, 256, 16
    $region21: #{tpu_custom_call.1} parent=1 // pred_fallthru
      _
    // Predicated region
    $region22: #{tpu_custom_call.1} parent=1 // pred_check
      _
    $region23: #{tpu_custom_call.1} parent=1 // pred_check_branch
      %407 = sbr.rel (0) target = $region25
    $region24: #{tpu_custom_call.1} parent=1 // pred_region
      %408 = dma.done [#allocation4], 512
    $region25: #{tpu_custom_call.1} parent=1 // pred_fallthru
      _
    %409 = vsyncpa [#allocation3], 1
    %410 = vsyncpa [#allocation4], 1

</llo_original>
